<compile_context>
chip_gen: v6e
topology: v6e:2x2x1
jax: 0.10.0
libtpu: 0.0.40
codegen_flags: <defaults>
</compile_context>

<pallas_src>
import math
import functools

import jax
import jax.numpy as jnp
from jax import lax
from jax.experimental import pallas as pl
from jax.experimental.pallas import tpu as pltpu


def _round_up(x, m):
    return (x + m - 1) // m * m


def _sdpa_scores_kernel(q_ref, k_ref, m_ref, o_ref, *, scale):
    # q_ref: (TB, Lq, dk), k_ref: (TB, Lk, dk), m_ref: (TB, Lq, Lk) int8
    # o_ref: (TB, Lq, Lk) f32
    q = q_ref[...] * scale                     # scale the small (Lq x dk) operand
    k = k_ref[...]
    # Batched contraction on the last axis of both operands: no explicit K
    # transpose, MXU consumes K in its natural (Lk, dk) layout.
    scores = lax.dot_general(
        q, k,
        dimension_numbers=(((2,), (2,)), ((0,), (0,))),
        preferred_element_type=jnp.float32)
    mask = m_ref[...] != 0                     # int8 -> bool
    o_ref[...] = jnp.where(mask, jnp.float32(-1e9), scores)


def sscaled_dot_product_attention(Q, K, attn_mask, d_k):
    """Q: [B,H,Lq,d_k], K: [B,H,Lk,d_k], attn_mask: [B,H,Lq,Lk] bool -> [B,H,Lq,Lk] f32."""
    B, H, Lq, dk = Q.shape
    Lk = K.shape[2]
    assert dk == d_k

    BH = B * H
    q = Q.reshape(BH, Lq, dk)
    k = K.reshape(BH, Lk, dk)
    m = attn_mask.reshape(BH, Lq, Lk).astype(jnp.int8)

    # Lane-dense output: pad Lk to a multiple of 128 when the overhead is modest
    # (<= 2x). Padded columns are sliced off before returning, so semantics are
    # unchanged.
    Lk_p = _round_up(Lk, 128)
    if Lk_p > 2 * Lk:
        Lk_p = Lk
    if Lk_p != Lk:
        k = jnp.pad(k, ((0, 0), (0, Lk_p - Lk), (0, 0)))
        m = jnp.pad(m, ((0, 0), (0, 0), (0, Lk_p - Lk)))

    # Pick how many (batch, head) slices to process per grid step: largest TB
    # whose double-buffered working set fits a conservative VMEM budget.
    bytes_q = Lq * dk * q.dtype.itemsize
    bytes_k = Lk_p * dk * k.dtype.itemsize
    bytes_mo = Lq * Lk_p * (1 + 4)            # int8 mask + f32 scores
    per_head = bytes_q + bytes_k + bytes_mo
    budget = 12 * 1024 * 1024                 # double-buffered working set target
    tb = 1
    for cand in (32, 16, 8, 4, 2, 1):
        if cand <= BH and 2 * cand * per_head <= budget:
            tb = cand
            break

    # Pad the flattened head axis to a multiple of TB (zero heads compute
    # zeros and are sliced off).
    BH_p = _round_up(BH, tb)
    if BH_p != BH:
        pad = BH_p - BH
        q = jnp.pad(q, ((0, pad), (0, 0), (0, 0)))
        k = jnp.pad(k, ((0, pad), (0, 0), (0, 0)))
        m = jnp.pad(m, ((0, pad), (0, 0), (0, 0)))

    scale = 1.0 / math.sqrt(d_k)
    kernel = functools.partial(_sdpa_scores_kernel, scale=scale)

    out = pl.pallas_call(
        kernel,
        out_shape=jax.ShapeDtypeStruct((BH_p, Lq, Lk_p), jnp.float32),
        grid_spec=pltpu.PrefetchScalarGridSpec(
            num_scalar_prefetch=0,
            grid=(BH_p // tb,),
            in_specs=[
                pl.BlockSpec((tb, Lq, dk), lambda i: (i, 0, 0)),
                pl.BlockSpec((tb, Lk_p, dk), lambda i: (i, 0, 0)),
                pl.BlockSpec((tb, Lq, Lk_p), lambda i: (i, 0, 0)),
            ],
            out_specs=pl.BlockSpec((tb, Lq, Lk_p), lambda i: (i, 0, 0)),
        ),
        compiler_params=pltpu.CompilerParams(
            dimension_semantics=("parallel",),
            vmem_limit_bytes=32 * 1024 * 1024),
    )(q, k, m)

    out = out[:BH, :, :Lk]
    return out.reshape(B, H, Lq, Lk)


def _reference(Q, K, attn_mask, d_k):
    scores = jnp.einsum("bhqd,bhkd->bhqk", Q, K) / math.sqrt(d_k)
    return jnp.where(attn_mask, jnp.float32(-1e9), scores)


if __name__ == "__main__":
    key = jax.random.PRNGKey(0)
    kq, kk, km = jax.random.split(key, 3)

    B, H, L, d_k = 2, 4, 16, 32

    Q = jax.random.normal(kq, (B, H, L, d_k), dtype=jnp.float32)
    K = jax.random.normal(kk, (B, H, L, d_k), dtype=jnp.float32)
    attn_mask = jax.random.bernoulli(km, p=0.3, shape=(B, H, L, L))

    out = sscaled_dot_product_attention(Q, K, attn_mask, d_k)
    out = jax.block_until_ready(out)

    ref = _reference(Q, K, attn_mask, d_k)
    assert out.shape == (B, H, L, L)
    assert jnp.allclose(out, ref, atol=1e-5, rtol=1e-5)

    print("KERNEL_OK")
</pallas_src>

<mosaic_0001>
module attributes {stable_mosaic.version = 11 : i64} {
  func.func @_sdpa_scores_kernel(%arg0: i32, %arg1: memref<8x16x32xf32, #tpu.memory_space<vmem>>, %arg2: memref<8x16x32xf32, #tpu.memory_space<vmem>>, %arg3: memref<8x16x16xi8, #tpu.memory_space<vmem>>, %arg4: memref<8x16x16xf32, #tpu.memory_space<vmem>>) attributes {dimension_semantics = [#tpu.dimension_semantics<parallel>], iteration_bounds = array<i64: 1>, scalar_prefetch = 0 : i64, scratch_operands = 0 : i64, tpu.core_type = #tpu.core_type<tc>, window_params = [{transform_indices = @transform_0, window_bounds = array<i64: 8, 16, 32>}, {transform_indices = @transform_1, window_bounds = array<i64: 8, 16, 32>}, {transform_indices = @transform_2, window_bounds = array<i64: 8, 16, 16>}, {transform_indices = @transform_3, window_bounds = array<i64: 8, 16, 16>}]} {
    %c0 = arith.constant 0 : index
    %c0_0 = arith.constant 0 : index
    %c0_1 = arith.constant 0 : index
    %0 = vector.load %arg1[%c0, %c0_0, %c0_1] : memref<8x16x32xf32, #tpu.memory_space<vmem>>, vector<8x16x32xf32>
    %cst = arith.constant 0.176776692 : f32
    %1 = vector.broadcast %cst : f32 to vector<8x16x32xf32>
    %2 = arith.mulf %0, %1 : vector<8x16x32xf32>
    %c0_2 = arith.constant 0 : index
    %c0_3 = arith.constant 0 : index
    %c0_4 = arith.constant 0 : index
    %3 = vector.load %arg2[%c0_2, %c0_3, %c0_4] : memref<8x16x32xf32, #tpu.memory_space<vmem>>, vector<8x16x32xf32>
    %cst_5 = arith.constant dense<0.000000e+00> : vector<8x16x16xf32>
    %4 = tpu.matmul %2, %3, %cst_5 {dimension_numbers = #tpu.dot_dimension_numbers<[2], [2], [1], [1], [0, 0, 0, 1, 1, 1], [0], [0]>} : vector<8x16x32xf32>, vector<8x16x32xf32>, vector<8x16x16xf32> -> vector<8x16x16xf32>
    %c0_6 = arith.constant 0 : index
    %c0_7 = arith.constant 0 : index
    %c0_8 = arith.constant 0 : index
    %5 = vector.load %arg3[%c0_6, %c0_7, %c0_8] : memref<8x16x16xi8, #tpu.memory_space<vmem>>, vector<8x16x16xi8>
    %c0_i8 = arith.constant 0 : i8
    %6 = vector.broadcast %c0_i8 : i8 to vector<8x16x16xi8>
    %7 = arith.cmpi ne, %5, %6 : vector<8x16x16xi8>
    %cst_9 = arith.constant -1.000000e+09 : f32
    %8 = vector.broadcast %cst_9 : f32 to vector<8x16x16xf32>
    %9 = arith.select %7, %8, %4 : vector<8x16x16xi1>, vector<8x16x16xf32>
    %c0_10 = arith.constant 0 : index
    %c0_11 = arith.constant 0 : index
    %c0_12 = arith.constant 0 : index
    %10 = vector.load %arg4[%c0_10, %c0_11, %c0_12] : memref<8x16x16xf32, #tpu.memory_space<vmem>>, vector<8x16x16xf32>
    tpu.vector_store %arg4[%c0_10, %c0_11, %c0_12], %9 {strides = array<i32>} : memref<8x16x16xf32, #tpu.memory_space<vmem>>, vector<8x16x16xf32>,
    return
  }
  func.func @transform_0(%arg0: i32) -> (i32, i32, i32) {
    %c0_i32 = arith.constant 0 : i32
    %c0_i32_0 = arith.constant 0 : i32
    %c0_i32_1 = arith.constant 0 : i32
    return %arg0, %c0_i32, %c0_i32_0 : i32, i32, i32
  }
  func.func @transform_1(%arg0: i32) -> (i32, i32, i32) {
    %c0_i32 = arith.constant 0 : i32
    %c0_i32_0 = arith.constant 0 : i32
    %c0_i32_1 = arith.constant 0 : i32
    return %arg0, %c0_i32, %c0_i32_0 : i32, i32, i32
  }
  func.func @transform_2(%arg0: i32) -> (i32, i32, i32) {
    %c0_i32 = arith.constant 0 : i32
    %c0_i32_0 = arith.constant 0 : i32
    %c0_i32_1 = arith.constant 0 : i32
    return %arg0, %c0_i32, %c0_i32_0 : i32, i32, i32
  }
  func.func @transform_3(%arg0: i32) -> (i32, i32, i32) {
    %c0_i32 = arith.constant 0 : i32
    %c0_i32_0 = arith.constant 0 : i32
    %c0_i32_1 = arith.constant 0 : i32
    return %arg0, %c0_i32, %c0_i32_0 : i32, i32, i32
  }
}

</mosaic_0001>

<llo_original>
// kernel: tpu_custom_call.1
$region0: #{tpu_custom_call.1}
  #allocation0 [shape = 'u32[]', space=smem, size = 0x4, offset = 0x4, fixed_abs, tag = 'smem constant byte address 0x4 - core index']
  #allocation1 [shape = 'u32[144,128]{1,0:T(1,128)}', space=vmem, size = 0x12000, scoped, tag = 'internal scratch']
  %s0 = inlined_call_operand.hbm [shape: f32[8,16,32], index: 0, kind: input, shape index: {}]
  %s1 = inlined_call_operand.hbm [shape: f32[8,16,32], index: 1, kind: input, shape index: {}]
  %s2 = inlined_call_operand.hbm [shape: s8[8,16,16], index: 2, kind: input, shape index: {}]
  %s3 = inlined_call_operand.hbm [shape: f32[8,16,16], index: 3, kind: output, shape index: {}]
  %s4 = sld [smem:[#allocation0]]
  $region34: #{tpu_custom_call.1} parent=0
    _
  %s6 = ssub.s32 1, %s4
  %s7 = scalar_select 0, %s6, %s4
  $region1: #{tpu_custom_call.1} parent=0
    #allocation2 [shape = 'u8[65536]{0}', space=vmem, size = 0x10000, scoped, tag = 'input window, operand 0, single buffered']
    #allocation3 [shape = 's32[1]{0}', space=sflag, size = 0x4, scoped, tag = 'scoped memory for tpu_custom_call.1']
    #allocation4 [shape = 's32[1]{0}', space=sflag, size = 0x4, scoped, tag = 'scoped memory for tpu_custom_call.1']
    #allocation5 [shape = 'u8[65536]{0}', space=vmem, size = 0x10000, scoped, tag = 'input window, operand 1, single buffered']
    #allocation6 [shape = 's32[1]{0}', space=sflag, size = 0x4, scoped, tag = 'scoped memory for tpu_custom_call.1']
    #allocation7 [shape = 'u8[16384]{0}', space=vmem, size = 0x4000, scoped, tag = 'input window, operand 2, single buffered']
    #allocation8 [shape = 'u8[65536]{0}', space=vmem, size = 0x10000, scoped, tag = 'output window, operand 0, single buffered']
    %8 = vsyncpa [#allocation3], 0
    %9 = vsyncpa [#allocation6], 0
    %10 = vsyncpa [#allocation4], 0
    // Predicated region
    $region2: #{tpu_custom_call.1} parent=1 // pred_check
      _
    $region3: #{tpu_custom_call.1} parent=1 // pred_check_branch
      %12 = sbr.rel (0) target = $region5
    $region4: #{tpu_custom_call.1} parent=1 // pred_region
      %s14 = ssub.s32 2048, 2048
      %15 = vsyncadd [#allocation3], %s14
      %s16 = sshll.u32 [#allocation2], 4
      %s17 = int_to_ptr.vmem [resolvable:$true] %s16
      %22 = dma.hbm_to_vmem [thread:$0]  %s0, 2048, %s17, [#allocation3], 128, 128, 8
    $region5: #{tpu_custom_call.1} parent=1 // pred_fallthru
      _
    // Predicated region
    $region6: #{tpu_custom_call.1} parent=1 // pred_check
      _
    $region7: #{tpu_custom_call.1} parent=1 // pred_check_branch
      %24 = sbr.rel (0) target = $region9
    $region8: #{tpu_custom_call.1} parent=1 // pred_region
      %s26 = ssub.s32 2048, 2048
      %27 = vsyncadd [#allocation6], %s26
      %s28 = sshll.u32 [#allocation5], 4
      %s29 = int_to_ptr.vmem [resolvable:$true] %s28
      %34 = dma.hbm_to_vmem [thread:$0]  %s1, 2048, %s29, [#allocation6], 128, 128, 8
    $region9: #{tpu_custom_call.1} parent=1 // pred_fallthru
      _
    // Predicated region
    $region10: #{tpu_custom_call.1} parent=1 // pred_check
      _
    $region11: #{tpu_custom_call.1} parent=1 // pred_check_branch
      %36 = sbr.rel (0) target = $region13
    $region12: #{tpu_custom_call.1} parent=1 // pred_region
      %s38 = ssub.s32 512, 512
      %39 = vsyncadd [#allocation6], %s38
      %s40 = sshll.u32 [#allocation7], 4
      %s41 = int_to_ptr.vmem [resolvable:$true] %s40
      %46 = dma.hbm_to_vmem [thread:$0]  %s2, 512, %s41, [#allocation6], 32, 32, 2
    $region13: #{tpu_custom_call.1} parent=1 // pred_fallthru
      _
    // Predicated region
    $region14: #{tpu_custom_call.1} parent=1 // pred_check
      _
    $region15: #{tpu_custom_call.1} parent=1 // pred_check_branch
      %48 = sbr.rel (0) target = $region17
    $region16: #{tpu_custom_call.1} parent=1 // pred_region
      %49 = dma.done [#allocation3], 2048
    $region17: #{tpu_custom_call.1} parent=1 // pred_fallthru
      _
    // Predicated region
    $region18: #{tpu_custom_call.1} parent=1 // pred_check
      _
    $region19: #{tpu_custom_call.1} parent=1 // pred_check_branch
      %51 = sbr.rel (0) target = $region21
    $region20: #{tpu_custom_call.1} parent=1 // pred_region
      %52 = dma.done [#allocation6], 2048
    $region21: #{tpu_custom_call.1} parent=1 // pred_fallthru
      _
    // Predicated region
    $region22: #{tpu_custom_call.1} parent=1 // pred_check
      _
    $region23: #{tpu_custom_call.1} parent=1 // pred_check_branch
      %54 = sbr.rel (0) target = $region25
    $region24: #{tpu_custom_call.1} parent=1 // pred_region
      %55 = dma.done [#allocation6], 512
    $region25: #{tpu_custom_call.1} parent=1 // pred_fallthru
      _
    %v58 = vld [vmem:[#allocation2] sm:$0xff]
    %v59 = vld [vmem:[#allocation2 + $0x8] sm:$0xff]
    %v60 = vld [vmem:[#allocation2 + $0x10] sm:$0xff]
    %v61 = vld [vmem:[#allocation2 + $0x18] sm:$0xff]
    %v62 = vld [vmem:[#allocation2 + $0x20] sm:$0xff]
    %v63 = vld [vmem:[#allocation2 + $0x28] sm:$0xff]
    %v64 = vld [vmem:[#allocation2 + $0x30] sm:$0xff]
    %v65 = vld [vmem:[#allocation2 + $0x38] sm:$0xff]
    %v66 = vld [vmem:[#allocation2 + $0x40] sm:$0xff]
    %v67 = vld [vmem:[#allocation2 + $0x48] sm:$0xff]
    %v68 = vld [vmem:[#allocation2 + $0x50] sm:$0xff]
    %v69 = vld [vmem:[#allocation2 + $0x58] sm:$0xff]
    %v70 = vld [vmem:[#allocation2 + $0x60] sm:$0xff]
    %v71 = vld [vmem:[#allocation2 + $0x68] sm:$0xff]
    %v72 = vld [vmem:[#allocation2 + $0x70] sm:$0xff]
    %v73 = vld [vmem:[#allocation2 + $0x78] sm:$0xff]
    %v74 = vmul.f32 %v58, 0.17677669
    %v75 = vmul.f32 %v59, 0.17677669
    %v76 = vmul.f32 %v60, 0.17677669
    %v77 = vmul.f32 %v61, 0.17677669
    %v78 = vmul.f32 %v62, 0.17677669
    %v79 = vmul.f32 %v63, 0.17677669
    %v80 = vmul.f32 %v64, 0.17677669
    %v81 = vmul.f32 %v65, 0.17677669
    %v82 = vmul.f32 %v66, 0.17677669
    %v83 = vmul.f32 %v67, 0.17677669
    %v84 = vmul.f32 %v68, 0.17677669
    %v85 = vmul.f32 %v69, 0.17677669
    %v86 = vmul.f32 %v70, 0.17677669
    %v87 = vmul.f32 %v71, 0.17677669
    %v88 = vmul.f32 %v72, 0.17677669
    %v89 = vmul.f32 %v73, 0.17677669
    %v90 = vld [vmem:[#allocation5] sm:$0xff]
    %v91 = vld [vmem:[#allocation5 + $0x8] sm:$0xff]
    %v92 = vld [vmem:[#allocation5 + $0x10] sm:$0xff]
    %v93 = vld [vmem:[#allocation5 + $0x18] sm:$0xff]
    %v94 = vld [vmem:[#allocation5 + $0x20] sm:$0xff]
    %v95 = vld [vmem:[#allocation5 + $0x28] sm:$0xff]
    %v96 = vld [vmem:[#allocation5 + $0x30] sm:$0xff]
    %v97 = vld [vmem:[#allocation5 + $0x38] sm:$0xff]
    %v98 = vld [vmem:[#allocation5 + $0x40] sm:$0xff]
    %v99 = vld [vmem:[#allocation5 + $0x48] sm:$0xff]
    %v100 = vld [vmem:[#allocation5 + $0x50] sm:$0xff]
    %v101 = vld [vmem:[#allocation5 + $0x58] sm:$0xff]
    %v102 = vld [vmem:[#allocation5 + $0x60] sm:$0xff]
    %v103 = vld [vmem:[#allocation5 + $0x68] sm:$0xff]
    %v104 = vld [vmem:[#allocation5 + $0x70] sm:$0xff]
    %v105 = vld [vmem:[#allocation5 + $0x78] sm:$0xff]
    %vm106 = vcmask 261120
    %v108 = vsel %vm106, %v74, 0
    %v111 = vsel %vm106, %v75, 0
    %v114 = vsel %vm106, %v90, 0
    %v117 = vsel %vm106, %v91, 0
    %119 = vmatprep.subr.mxu0 0.0
    %120 = vmatpush1.xpose.msra.mxu0 0.0
    %121 = vmatprep.subr.mxu0 0.0
    %122 = vmatpush1.xpose.msra.mxu0 0.0
    %123 = vmatprep.subr.mxu0 0.0
    %124 = vmatpush1.xpose.msra.mxu0 0.0
    %125 = vmatprep.subr.mxu0 0.0
    %126 = vmatpush1.xpose.msra.mxu0 0.0
    %127 = vmatprep.subr.mxu0 0.0
    %128 = vmatpush1.xpose.msra.mxu0 0.0
    %129 = vmatprep.subr.mxu0 0.0
    %130 = vmatpush1.xpose.msra.mxu0 0.0
    %131 = vmatprep.subr.mxu0 0.0
    %132 = vmatpush1.xpose.msra.mxu0 0.0
    %133 = vmatprep.subr.mxu0 0.0
    %134 = vmatpush1.xpose.msra.mxu0 0.0
    %135 = vmatprep.subr.mxu0 0.0
    %136 = vmatpush1.xpose.msra.mxu0 0.0
    %137 = vmatprep.subr.mxu0 0.0
    %138 = vmatpush1.xpose.msra.mxu0 0.0
    %139 = vmatprep.subr.mxu0 0.0
    %140 = vmatpush1.xpose.msra.mxu0 0.0
    %141 = vmatprep.subr.mxu0 0.0
    %142 = vmatpush1.xpose.msra.mxu0 0.0
    %143 = vmatprep.subr.mxu0 0.0
    %144 = vmatpush1.xpose.msra.mxu0 0.0
    %145 = vmatprep.subr.mxu0 0.0
    %146 = vmatpush1.xpose.msra.mxu0 0.0
    %147 = vmatprep.subr.mxu0 0.0
    %148 = vmatpush1.xpose.msra.mxu0 %v117
    %149 = vmatprep.subr.mxu0 0.0
    %150 = vmatpush1.xpose.msra.mxu0 %v114
    %151 = vmatprep.subr.mxu0 0.0
    %152 = vmatpush2.xpose.msra.mxu0 0.0
    %153 = vmatprep.subr.mxu0 0.0
    %154 = vmatpush2.xpose.msra.mxu0 0.0
    %155 = vmatprep.subr.mxu0 0.0
    %156 = vmatpush2.xpose.msra.mxu0 0.0
    %157 = vmatprep.subr.mxu0 0.0
    %158 = vmatpush2.xpose.msra.mxu0 0.0
    %159 = vmatprep.subr.mxu0 0.0
    %160 = vmatpush2.xpose.msra.mxu0 0.0
    %161 = vmatprep.subr.mxu0 0.0
    %162 = vmatpush2.xpose.msra.mxu0 0.0
    %163 = vmatprep.subr.mxu0 0.0
    %164 = vmatpush2.xpose.msra.mxu0 0.0
    %165 = vmatprep.subr.mxu0 0.0
    %166 = vmatpush2.xpose.msra.mxu0 0.0
    %167 = vmatprep.subr.mxu0 0.0
    %168 = vmatpush2.xpose.msra.mxu0 0.0
    %169 = vmatprep.subr.mxu0 0.0
    %170 = vmatpush2.xpose.msra.mxu0 0.0
    %171 = vmatprep.subr.mxu0 0.0
    %172 = vmatpush2.xpose.msra.mxu0 0.0
    %173 = vmatprep.subr.mxu0 0.0
    %174 = vmatpush2.xpose.msra.mxu0 0.0
    %175 = vmatprep.subr.mxu0 0.0
    %176 = vmatpush2.xpose.msra.mxu0 0.0
    %177 = vmatprep.subr.mxu0 0.0
    %178 = vmatpush2.xpose.msra.mxu0 0.0
    %179 = vmatprep.subr.mxu0 0.0
    %180 = vmatpush2.xpose.msra.mxu0 0.0
    %181 = vmatprep.subr.mxu0 0.0
    %182 = vmatpush2.xpose.msra.mxu0 0.0
    %183 = vmatprep.mubr.f32.mxu0 0.0
    %184 = vmatmul.mubr.f32.gmra.mxu0 %v108
    %v185 = vpop.f32.mrf.mxu0
    %v186 = vadd.f32 0.0, %v185
    %v187 = vpop.f32.mrf.mxu0
    %188 = vmatprep.mubr.f32.mxu0 0.0
    %189 = vmatmul.mubr.f32.gmra.mxu0 %v111
    %v190 = vpop.f32.mrf.mxu0
    %v191 = vadd.f32 0.0, %v190
    %v192 = vpop.f32.mrf.mxu0
    %193 = vdwg.mxu0
    %v195 = vsel %vm106, %v76, 0
    %v198 = vsel %vm106, %v77, 0
    %v201 = vsel %vm106, %v92, 0
    %v204 = vsel %vm106, %v93, 0
    %206 = vmatprep.subr.mxu0 0.0
    %207 = vmatpush1.xpose.msra.mxu0 0.0
    %208 = vmatprep.subr.mxu0 0.0
    %209 = vmatpush1.xpose.msra.mxu0 0.0
    %210 = vmatprep.subr.mxu0 0.0
    %211 = vmatpush1.xpose.msra.mxu0 0.0
    %212 = vmatprep.subr.mxu0 0.0
    %213 = vmatpush1.xpose.msra.mxu0 0.0
    %214 = vmatprep.subr.mxu0 0.0
    %215 = vmatpush1.xpose.msra.mxu0 0.0
    %216 = vmatprep.subr.mxu0 0.0
    %217 = vmatpush1.xpose.msra.mxu0 0.0
    %218 = vmatprep.subr.mxu0 0.0
    %219 = vmatpush1.xpose.msra.mxu0 0.0
    %220 = vmatprep.subr.mxu0 0.0
    %221 = vmatpush1.xpose.msra.mxu0 0.0
    %222 = vmatprep.subr.mxu0 0.0
    %223 = vmatpush1.xpose.msra.mxu0 0.0
    %224 = vmatprep.subr.mxu0 0.0
    %225 = vmatpush1.xpose.msra.mxu0 0.0
    %226 = vmatprep.subr.mxu0 0.0
    %227 = vmatpush1.xpose.msra.mxu0 0.0
    %228 = vmatprep.subr.mxu0 0.0
    %229 = vmatpush1.xpose.msra.mxu0 0.0
    %230 = vmatprep.subr.mxu0 0.0
    %231 = vmatpush1.xpose.msra.mxu0 0.0
    %232 = vmatprep.subr.mxu0 0.0
    %233 = vmatpush1.xpose.msra.mxu0 0.0
    %234 = vmatprep.subr.mxu0 0.0
    %235 = vmatpush1.xpose.msra.mxu0 %v204
    %236 = vmatprep.subr.mxu0 0.0
    %237 = vmatpush1.xpose.msra.mxu0 %v201
    %238 = vmatprep.subr.mxu0 0.0
    %239 = vmatpush2.xpose.msra.mxu0 0.0
    %240 = vmatprep.subr.mxu0 0.0
    %241 = vmatpush2.xpose.msra.mxu0 0.0
    %242 = vmatprep.subr.mxu0 0.0
    %243 = vmatpush2.xpose.msra.mxu0 0.0
    %244 = vmatprep.subr.mxu0 0.0
    %245 = vmatpush2.xpose.msra.mxu0 0.0
    %246 = vmatprep.subr.mxu0 0.0
    %247 = vmatpush2.xpose.msra.mxu0 0.0
    %248 = vmatprep.subr.mxu0 0.0
    %249 = vmatpush2.xpose.msra.mxu0 0.0
    %250 = vmatprep.subr.mxu0 0.0
    %251 = vmatpush2.xpose.msra.mxu0 0.0
    %252 = vmatprep.subr.mxu0 0.0
    %253 = vmatpush2.xpose.msra.mxu0 0.0
    %254 = vmatprep.subr.mxu0 0.0
    %255 = vmatpush2.xpose.msra.mxu0 0.0
    %256 = vmatprep.subr.mxu0 0.0
    %257 = vmatpush2.xpose.msra.mxu0 0.0
    %258 = vmatprep.subr.mxu0 0.0
    %259 = vmatpush2.xpose.msra.mxu0 0.0
    %260 = vmatprep.subr.mxu0 0.0
    %261 = vmatpush2.xpose.msra.mxu0 0.0
    %262 = vmatprep.subr.mxu0 0.0
    %263 = vmatpush2.xpose.msra.mxu0 0.0
    %264 = vmatprep.subr.mxu0 0.0
    %265 = vmatpush2.xpose.msra.mxu0 0.0
    %266 = vmatprep.subr.mxu0 0.0
    %267 = vmatpush2.xpose.msra.mxu0 0.0
    %268 = vmatprep.subr.mxu0 0.0
    %269 = vmatpush2.xpose.msra.mxu0 0.0
    %270 = vmatprep.mubr.f32.mxu0 0.0
    %271 = vmatmul.mubr.f32.gmra.mxu0 %v195
    %v272 = vpop.f32.mrf.mxu0
    %v273 = vadd.f32 0.0, %v272
    %v274 = vpop.f32.mrf.mxu0
    %275 = vmatprep.mubr.f32.mxu0 0.0
    %276 = vmatmul.mubr.f32.gmra.mxu0 %v198
    %v277 = vpop.f32.mrf.mxu0
    %v278 = vadd.f32 0.0, %v277
    %v279 = vpop.f32.mrf.mxu0
    %280 = vdwg.mxu0
    %v282 = vsel %vm106, %v78, 0
    %v285 = vsel %vm106, %v79, 0
    %v288 = vsel %vm106, %v94, 0
    %v291 = vsel %vm106, %v95, 0
    %293 = vmatprep.subr.mxu0 0.0
    %294 = vmatpush1.xpose.msra.mxu0 0.0
    %295 = vmatprep.subr.mxu0 0.0
    %296 = vmatpush1.xpose.msra.mxu0 0.0
    %297 = vmatprep.subr.mxu0 0.0
    %298 = vmatpush1.xpose.msra.mxu0 0.0
    %299 = vmatprep.subr.mxu0 0.0
    %300 = vmatpush1.xpose.msra.mxu0 0.0
    %301 = vmatprep.subr.mxu0 0.0
    %302 = vmatpush1.xpose.msra.mxu0 0.0
    %303 = vmatprep.subr.mxu0 0.0
    %304 = vmatpush1.xpose.msra.mxu0 0.0
    %305 = vmatprep.subr.mxu0 0.0
    %306 = vmatpush1.xpose.msra.mxu0 0.0
    %307 = vmatprep.subr.mxu0 0.0
    %308 = vmatpush1.xpose.msra.mxu0 0.0
    %309 = vmatprep.subr.mxu0 0.0
    %310 = vmatpush1.xpose.msra.mxu0 0.0
    %311 = vmatprep.subr.mxu0 0.0
    %312 = vmatpush1.xpose.msra.mxu0 0.0
    %313 = vmatprep.subr.mxu0 0.0
    %314 = vmatpush1.xpose.msra.mxu0 0.0
    %315 = vmatprep.subr.mxu0 0.0
    %316 = vmatpush1.xpose.msra.mxu0 0.0
    %317 = vmatprep.subr.mxu0 0.0
    %318 = vmatpush1.xpose.msra.mxu0 0.0
    %319 = vmatprep.subr.mxu0 0.0
    %320 = vmatpush1.xpose.msra.mxu0 0.0
    %321 = vmatprep.subr.mxu0 0.0
    %322 = vmatpush1.xpose.msra.mxu0 %v291
    %323 = vmatprep.subr.mxu0 0.0
    %324 = vmatpush1.xpose.msra.mxu0 %v288
    %325 = vmatprep.subr.mxu0 0.0
    %326 = vmatpush2.xpose.msra.mxu0 0.0
    %327 = vmatprep.subr.mxu0 0.0
    %328 = vmatpush2.xpose.msra.mxu0 0.0
    %329 = vmatprep.subr.mxu0 0.0
    %330 = vmatpush2.xpose.msra.mxu0 0.0
    %331 = vmatprep.subr.mxu0 0.0
    %332 = vmatpush2.xpose.msra.mxu0 0.0
    %333 = vmatprep.subr.mxu0 0.0
    %334 = vmatpush2.xpose.msra.mxu0 0.0
    %335 = vmatprep.subr.mxu0 0.0
    %336 = vmatpush2.xpose.msra.mxu0 0.0
    %337 = vmatprep.subr.mxu0 0.0
    %338 = vmatpush2.xpose.msra.mxu0 0.0
    %339 = vmatprep.subr.mxu0 0.0
    %340 = vmatpush2.xpose.msra.mxu0 0.0
    %341 = vmatprep.subr.mxu0 0.0
    %342 = vmatpush2.xpose.msra.mxu0 0.0
    %343 = vmatprep.subr.mxu0 0.0
    %344 = vmatpush2.xpose.msra.mxu0 0.0
    %345 = vmatprep.subr.mxu0 0.0
    %346 = vmatpush2.xpose.msra.mxu0 0.0
    %347 = vmatprep.subr.mxu0 0.0
    %348 = vmatpush2.xpose.msra.mxu0 0.0
    %349 = vmatprep.subr.mxu0 0.0
    %350 = vmatpush2.xpose.msra.mxu0 0.0
    %351 = vmatprep.subr.mxu0 0.0
    %352 = vmatpush2.xpose.msra.mxu0 0.0
    %353 = vmatprep.subr.mxu0 0.0
    %354 = vmatpush2.xpose.msra.mxu0 0.0
    %355 = vmatprep.subr.mxu0 0.0
    %356 = vmatpush2.xpose.msra.mxu0 0.0
    %357 = vmatprep.mubr.f32.mxu0 0.0
    %358 = vmatmul.mubr.f32.gmra.mxu0 %v282
    %v359 = vpop.f32.mrf.mxu0
    %v360 = vadd.f32 0.0, %v359
    %v361 = vpop.f32.mrf.mxu0
    %362 = vmatprep.mubr.f32.mxu0 0.0
    %363 = vmatmul.mubr.f32.gmra.mxu0 %v285
    %v364 = vpop.f32.mrf.mxu0
    %v365 = vadd.f32 0.0, %v364
    %v366 = vpop.f32.mrf.mxu0
    %367 = vdwg.mxu0
    %v369 = vsel %vm106, %v80, 0
    %v372 = vsel %vm106, %v81, 0
    %v375 = vsel %vm106, %v96, 0
    %v378 = vsel %vm106, %v97, 0
    %380 = vmatprep.subr.mxu0 0.0
    %381 = vmatpush1.xpose.msra.mxu0 0.0
    %382 = vmatprep.subr.mxu0 0.0
    %383 = vmatpush1.xpose.msra.mxu0 0.0
    %384 = vmatprep.subr.mxu0 0.0
    %385 = vmatpush1.xpose.msra.mxu0 0.0
    %386 = vmatprep.subr.mxu0 0.0
    %387 = vmatpush1.xpose.msra.mxu0 0.0
    %388 = vmatprep.subr.mxu0 0.0
    %389 = vmatpush1.xpose.msra.mxu0 0.0
    %390 = vmatprep.subr.mxu0 0.0
    %391 = vmatpush1.xpose.msra.mxu0 0.0
    %392 = vmatprep.subr.mxu0 0.0
    %393 = vmatpush1.xpose.msra.mxu0 0.0
    %394 = vmatprep.subr.mxu0 0.0
    %395 = vmatpush1.xpose.msra.mxu0 0.0
    %396 = vmatprep.subr.mxu0 0.0
    %397 = vmatpush1.xpose.msra.mxu0 0.0
    %398 = vmatprep.subr.mxu0 0.0
    %399 = vmatpush1.xpose.msra.mxu0 0.0
    %400 = vmatprep.subr.mxu0 0.0
    %401 = vmatpush1.xpose.msra.mxu0 0.0
    %402 = vmatprep.subr.mxu0 0.0
    %403 = vmatpush1.xpose.msra.mxu0 0.0
    %404 = vmatprep.subr.mxu0 0.0
    %405 = vmatpush1.xpose.msra.mxu0 0.0
    %406 = vmatprep.subr.mxu0 0.0
    %407 = vmatpush1.xpose.msra.mxu0 0.0
    %408 = vmatprep.subr.mxu0 0.0
    %409 = vmatpush1.xpose.msra.mxu0 %v378
    %410 = vmatprep.subr.mxu0 0.0
    %411 = vmatpush1.xpose.msra.mxu0 %v375
    %412 = vmatprep.subr.mxu0 0.0
    %413 = vmatpush2.xpose.msra.mxu0 0.0
    %414 = vmatprep.subr.mxu0 0.0
    %415 = vmatpush2.xpose.msra.mxu0 0.0
    %416 = vmatprep.subr.mxu0 0.0
    %417 = vmatpush2.xpose.msra.mxu0 0.0
    %418 = vmatprep.subr.mxu0 0.0
    %419 = vmatpush2.xpose.msra.mxu0 0.0
    %420 = vmatprep.subr.mxu0 0.0
    %421 = vmatpush2.xpose.msra.mxu0 0.0
    %422 = vmatprep.subr.mxu0 0.0
    %423 = vmatpush2.xpose.msra.mxu0 0.0
    %424 = vmatprep.subr.mxu0 0.0
    %425 = vmatpush2.xpose.msra.mxu0 0.0
    %426 = vmatprep.subr.mxu0 0.0
    %427 = vmatpush2.xpose.msra.mxu0 0.0
    %428 = vmatprep.subr.mxu0 0.0
    %429 = vmatpush2.xpose.msra.mxu0 0.0
    %430 = vmatprep.subr.mxu0 0.0
    %431 = vmatpush2.xpose.msra.mxu0 0.0
    %432 = vmatprep.subr.mxu0 0.0
    %433 = vmatpush2.xpose.msra.mxu0 0.0
    %434 = vmatprep.subr.mxu0 0.0
    %435 = vmatpush2.xpose.msra.mxu0 0.0
    %436 = vmatprep.subr.mxu0 0.0
    %437 = vmatpush2.xpose.msra.mxu0 0.0
    %438 = vmatprep.subr.mxu0 0.0
    %439 = vmatpush2.xpose.msra.mxu0 0.0
    %440 = vmatprep.subr.mxu0 0.0
    %441 = vmatpush2.xpose.msra.mxu0 0.0
    %442 = vmatprep.subr.mxu0 0.0
    %443 = vmatpush2.xpose.msra.mxu0 0.0
    %444 = vmatprep.mubr.f32.mxu0 0.0
    %445 = vmatmul.mubr.f32.gmra.mxu0 %v369
    %v446 = vpop.f32.mrf.mxu0
    %v447 = vadd.f32 0.0, %v446
    %v448 = vpop.f32.mrf.mxu0
    %449 = vmatprep.mubr.f32.mxu0 0.0
    %450 = vmatmul.mubr.f32.gmra.mxu0 %v372
    %v451 = vpop.f32.mrf.mxu0
    %v452 = vadd.f32 0.0, %v451
    %v453 = vpop.f32.mrf.mxu0
    %454 = vdwg.mxu0
    %v456 = vsel %vm106, %v82, 0
    %v459 = vsel %vm106, %v83, 0
    %v462 = vsel %vm106, %v98, 0
    %v465 = vsel %vm106, %v99, 0
    %467 = vmatprep.subr.mxu0 0.0
    %468 = vmatpush1.xpose.msra.mxu0 0.0
    %469 = vmatprep.subr.mxu0 0.0
    %470 = vmatpush1.xpose.msra.mxu0 0.0
    %471 = vmatprep.subr.mxu0 0.0
    %472 = vmatpush1.xpose.msra.mxu0 0.0
    %473 = vmatprep.subr.mxu0 0.0
    %474 = vmatpush1.xpose.msra.mxu0 0.0
    %475 = vmatprep.subr.mxu0 0.0
    %476 = vmatpush1.xpose.msra.mxu0 0.0
    %477 = vmatprep.subr.mxu0 0.0
    %478 = vmatpush1.xpose.msra.mxu0 0.0
    %479 = vmatprep.subr.mxu0 0.0
    %480 = vmatpush1.xpose.msra.mxu0 0.0
    %481 = vmatprep.subr.mxu0 0.0
    %482 = vmatpush1.xpose.msra.mxu0 0.0
    %483 = vmatprep.subr.mxu0 0.0
    %484 = vmatpush1.xpose.msra.mxu0 0.0
    %485 = vmatprep.subr.mxu0 0.0
    %486 = vmatpush1.xpose.msra.mxu0 0.0
    %487 = vmatprep.subr.mxu0 0.0
    %488 = vmatpush1.xpose.msra.mxu0 0.0
    %489 = vmatprep.subr.mxu0 0.0
    %490 = vmatpush1.xpose.msra.mxu0 0.0
    %491 = vmatprep.subr.mxu0 0.0
    %492 = vmatpush1.xpose.msra.mxu0 0.0
    %493 = vmatprep.subr.mxu0 0.0
    %494 = vmatpush1.xpose.msra.mxu0 0.0
    %495 = vmatprep.subr.mxu0 0.0
    %496 = vmatpush1.xpose.msra.mxu0 %v465
    %497 = vmatprep.subr.mxu0 0.0
    %498 = vmatpush1.xpose.msra.mxu0 %v462
    %499 = vmatprep.subr.mxu0 0.0
    %500 = vmatpush2.xpose.msra.mxu0 0.0
    %501 = vmatprep.subr.mxu0 0.0
    %502 = vmatpush2.xpose.msra.mxu0 0.0
    %503 = vmatprep.subr.mxu0 0.0
    %504 = vmatpush2.xpose.msra.mxu0 0.0
    %505 = vmatprep.subr.mxu0 0.0
    %506 = vmatpush2.xpose.msra.mxu0 0.0
    %507 = vmatprep.subr.mxu0 0.0
    %508 = vmatpush2.xpose.msra.mxu0 0.0
    %509 = vmatprep.subr.mxu0 0.0
    %510 = vmatpush2.xpose.msra.mxu0 0.0
    %511 = vmatprep.subr.mxu0 0.0
    %512 = vmatpush2.xpose.msra.mxu0 0.0
    %513 = vmatprep.subr.mxu0 0.0
    %514 = vmatpush2.xpose.msra.mxu0 0.0
    %515 = vmatprep.subr.mxu0 0.0
    %516 = vmatpush2.xpose.msra.mxu0 0.0
    %517 = vmatprep.subr.mxu0 0.0
    %518 = vmatpush2.xpose.msra.mxu0 0.0
    %519 = vmatprep.subr.mxu0 0.0
    %520 = vmatpush2.xpose.msra.mxu0 0.0
    %521 = vmatprep.subr.mxu0 0.0
    %522 = vmatpush2.xpose.msra.mxu0 0.0
    %523 = vmatprep.subr.mxu0 0.0
    %524 = vmatpush2.xpose.msra.mxu0 0.0
    %525 = vmatprep.subr.mxu0 0.0
    %526 = vmatpush2.xpose.msra.mxu0 0.0
    %527 = vmatprep.subr.mxu0 0.0
    %528 = vmatpush2.xpose.msra.mxu0 0.0
    %529 = vmatprep.subr.mxu0 0.0
    %530 = vmatpush2.xpose.msra.mxu0 0.0
    %531 = vmatprep.mubr.f32.mxu0 0.0
    %532 = vmatmul.mubr.f32.gmra.mxu0 %v456
    %v533 = vpop.f32.mrf.mxu0
    %v534 = vadd.f32 0.0, %v533
    %v535 = vpop.f32.mrf.mxu0
    %536 = vmatprep.mubr.f32.mxu0 0.0
    %537 = vmatmul.mubr.f32.gmra.mxu0 %v459
    %v538 = vpop.f32.mrf.mxu0
    %v539 = vadd.f32 0.0, %v538
    %v540 = vpop.f32.mrf.mxu0
    %541 = vdwg.mxu0
    %v543 = vsel %vm106, %v84, 0
    %v546 = vsel %vm106, %v85, 0
    %v549 = vsel %vm106, %v100, 0
    %v552 = vsel %vm106, %v101, 0
    %554 = vmatprep.subr.mxu0 0.0
    %555 = vmatpush1.xpose.msra.mxu0 0.0
    %556 = vmatprep.subr.mxu0 0.0
    %557 = vmatpush1.xpose.msra.mxu0 0.0
    %558 = vmatprep.subr.mxu0 0.0
    %559 = vmatpush1.xpose.msra.mxu0 0.0
    %560 = vmatprep.subr.mxu0 0.0
    %561 = vmatpush1.xpose.msra.mxu0 0.0
    %562 = vmatprep.subr.mxu0 0.0
    %563 = vmatpush1.xpose.msra.mxu0 0.0
    %564 = vmatprep.subr.mxu0 0.0
    %565 = vmatpush1.xpose.msra.mxu0 0.0
    %566 = vmatprep.subr.mxu0 0.0
    %567 = vmatpush1.xpose.msra.mxu0 0.0
    %568 = vmatprep.subr.mxu0 0.0
    %569 = vmatpush1.xpose.msra.mxu0 0.0
    %570 = vmatprep.subr.mxu0 0.0
    %571 = vmatpush1.xpose.msra.mxu0 0.0
    %572 = vmatprep.subr.mxu0 0.0
    %573 = vmatpush1.xpose.msra.mxu0 0.0
    %574 = vmatprep.subr.mxu0 0.0
    %575 = vmatpush1.xpose.msra.mxu0 0.0
    %576 = vmatprep.subr.mxu0 0.0
    %577 = vmatpush1.xpose.msra.mxu0 0.0
    %578 = vmatprep.subr.mxu0 0.0
    %579 = vmatpush1.xpose.msra.mxu0 0.0
    %580 = vmatprep.subr.mxu0 0.0
    %581 = vmatpush1.xpose.msra.mxu0 0.0
    %582 = vmatprep.subr.mxu0 0.0
    %583 = vmatpush1.xpose.msra.mxu0 %v552
    %584 = vmatprep.subr.mxu0 0.0
    %585 = vmatpush1.xpose.msra.mxu0 %v549
    %586 = vmatprep.subr.mxu0 0.0
    %587 = vmatpush2.xpose.msra.mxu0 0.0
    %588 = vmatprep.subr.mxu0 0.0
    %589 = vmatpush2.xpose.msra.mxu0 0.0
    %590 = vmatprep.subr.mxu0 0.0
    %591 = vmatpush2.xpose.msra.mxu0 0.0
    %592 = vmatprep.subr.mxu0 0.0
    %593 = vmatpush2.xpose.msra.mxu0 0.0
    %594 = vmatprep.subr.mxu0 0.0
    %595 = vmatpush2.xpose.msra.mxu0 0.0
    %596 = vmatprep.subr.mxu0 0.0
    %597 = vmatpush2.xpose.msra.mxu0 0.0
    %598 = vmatprep.subr.mxu0 0.0
    %599 = vmatpush2.xpose.msra.mxu0 0.0
    %600 = vmatprep.subr.mxu0 0.0
    %601 = vmatpush2.xpose.msra.mxu0 0.0
    %602 = vmatprep.subr.mxu0 0.0
    %603 = vmatpush2.xpose.msra.mxu0 0.0
    %604 = vmatprep.subr.mxu0 0.0
    %605 = vmatpush2.xpose.msra.mxu0 0.0
    %606 = vmatprep.subr.mxu0 0.0
    %607 = vmatpush2.xpose.msra.mxu0 0.0
    %608 = vmatprep.subr.mxu0 0.0
    %609 = vmatpush2.xpose.msra.mxu0 0.0
    %610 = vmatprep.subr.mxu0 0.0
    %611 = vmatpush2.xpose.msra.mxu0 0.0
    %612 = vmatprep.subr.mxu0 0.0
    %613 = vmatpush2.xpose.msra.mxu0 0.0
    %614 = vmatprep.subr.mxu0 0.0
    %615 = vmatpush2.xpose.msra.mxu0 0.0
    %616 = vmatprep.subr.mxu0 0.0
    %617 = vmatpush2.xpose.msra.mxu0 0.0
    %618 = vmatprep.mubr.f32.mxu0 0.0
    %619 = vmatmul.mubr.f32.gmra.mxu0 %v543
    %v620 = vpop.f32.mrf.mxu0
    %v621 = vadd.f32 0.0, %v620
    %v622 = vpop.f32.mrf.mxu0
    %623 = vmatprep.mubr.f32.mxu0 0.0
    %624 = vmatmul.mubr.f32.gmra.mxu0 %v546
    %v625 = vpop.f32.mrf.mxu0
    %v626 = vadd.f32 0.0, %v625
    %v627 = vpop.f32.mrf.mxu0
    %628 = vdwg.mxu0
    %v630 = vsel %vm106, %v86, 0
    %v633 = vsel %vm106, %v87, 0
    %v636 = vsel %vm106, %v102, 0
    %v639 = vsel %vm106, %v103, 0
    %641 = vmatprep.subr.mxu0 0.0
    %642 = vmatpush1.xpose.msra.mxu0 0.0
    %643 = vmatprep.subr.mxu0 0.0
    %644 = vmatpush1.xpose.msra.mxu0 0.0
    %645 = vmatprep.subr.mxu0 0.0
    %646 = vmatpush1.xpose.msra.mxu0 0.0
    %647 = vmatprep.subr.mxu0 0.0
    %648 = vmatpush1.xpose.msra.mxu0 0.0
    %649 = vmatprep.subr.mxu0 0.0
    %650 = vmatpush1.xpose.msra.mxu0 0.0
    %651 = vmatprep.subr.mxu0 0.0
    %652 = vmatpush1.xpose.msra.mxu0 0.0
    %653 = vmatprep.subr.mxu0 0.0
    %654 = vmatpush1.xpose.msra.mxu0 0.0
    %655 = vmatprep.subr.mxu0 0.0
    %656 = vmatpush1.xpose.msra.mxu0 0.0
    %657 = vmatprep.subr.mxu0 0.0
    %658 = vmatpush1.xpose.msra.mxu0 0.0
    %659 = vmatprep.subr.mxu0 0.0
    %660 = vmatpush1.xpose.msra.mxu0 0.0
    %661 = vmatprep.subr.mxu0 0.0
    %662 = vmatpush1.xpose.msra.mxu0 0.0
    %663 = vmatprep.subr.mxu0 0.0
    %664 = vmatpush1.xpose.msra.mxu0 0.0
    %665 = vmatprep.subr.mxu0 0.0
    %666 = vmatpush1.xpose.msra.mxu0 0.0
    %667 = vmatprep.subr.mxu0 0.0
    %668 = vmatpush1.xpose.msra.mxu0 0.0
    %669 = vmatprep.subr.mxu0 0.0
    %670 = vmatpush1.xpose.msra.mxu0 %v639
    %671 = vmatprep.subr.mxu0 0.0
    %672 = vmatpush1.xpose.msra.mxu0 %v636
    %673 = vmatprep.subr.mxu0 0.0
    %674 = vmatpush2.xpose.msra.mxu0 0.0
    %675 = vmatprep.subr.mxu0 0.0
    %676 = vmatpush2.xpose.msra.mxu0 0.0
    %677 = vmatprep.subr.mxu0 0.0
    %678 = vmatpush2.xpose.msra.mxu0 0.0
    %679 = vmatprep.subr.mxu0 0.0
    %680 = vmatpush2.xpose.msra.mxu0 0.0
    %681 = vmatprep.subr.mxu0 0.0
    %682 = vmatpush2.xpose.msra.mxu0 0.0
    %683 = vmatprep.subr.mxu0 0.0
    %684 = vmatpush2.xpose.msra.mxu0 0.0
    %685 = vmatprep.subr.mxu0 0.0
    %686 = vmatpush2.xpose.msra.mxu0 0.0
    %687 = vmatprep.subr.mxu0 0.0
    %688 = vmatpush2.xpose.msra.mxu0 0.0
    %689 = vmatprep.subr.mxu0 0.0
    %690 = vmatpush2.xpose.msra.mxu0 0.0
    %691 = vmatprep.subr.mxu0 0.0
    %692 = vmatpush2.xpose.msra.mxu0 0.0
    %693 = vmatprep.subr.mxu0 0.0
    %694 = vmatpush2.xpose.msra.mxu0 0.0
    %695 = vmatprep.subr.mxu0 0.0
    %696 = vmatpush2.xpose.msra.mxu0 0.0
    %697 = vmatprep.subr.mxu0 0.0
    %698 = vmatpush2.xpose.msra.mxu0 0.0
    %699 = vmatprep.subr.mxu0 0.0
    %700 = vmatpush2.xpose.msra.mxu0 0.0
    %701 = vmatprep.subr.mxu0 0.0
    %702 = vmatpush2.xpose.msra.mxu0 0.0
    %703 = vmatprep.subr.mxu0 0.0
    %704 = vmatpush2.xpose.msra.mxu0 0.0
    %705 = vmatprep.mubr.f32.mxu0 0.0
    %706 = vmatmul.mubr.f32.gmra.mxu0 %v630
    %v707 = vpop.f32.mrf.mxu0
    %v708 = vadd.f32 0.0, %v707
    %v709 = vpop.f32.mrf.mxu0
    %710 = vmatprep.mubr.f32.mxu0 0.0
    %711 = vmatmul.mubr.f32.gmra.mxu0 %v633
    %v712 = vpop.f32.mrf.mxu0
    %v713 = vadd.f32 0.0, %v712
    %v714 = vpop.f32.mrf.mxu0
    %715 = vdwg.mxu0
    %v717 = vsel %vm106, %v88, 0
    %v720 = vsel %vm106, %v89, 0
    %v723 = vsel %vm106, %v104, 0
    %v726 = vsel %vm106, %v105, 0
    %728 = vmatprep.subr.mxu0 0.0
    %729 = vmatpush1.xpose.msra.mxu0 0.0
    %730 = vmatprep.subr.mxu0 0.0
    %731 = vmatpush1.xpose.msra.mxu0 0.0
    %732 = vmatprep.subr.mxu0 0.0
    %733 = vmatpush1.xpose.msra.mxu0 0.0
    %734 = vmatprep.subr.mxu0 0.0
    %735 = vmatpush1.xpose.msra.mxu0 0.0
    %736 = vmatprep.subr.mxu0 0.0
    %737 = vmatpush1.xpose.msra.mxu0 0.0
    %738 = vmatprep.subr.mxu0 0.0
    %739 = vmatpush1.xpose.msra.mxu0 0.0
    %740 = vmatprep.subr.mxu0 0.0
    %741 = vmatpush1.xpose.msra.mxu0 0.0
    %742 = vmatprep.subr.mxu0 0.0
    %743 = vmatpush1.xpose.msra.mxu0 0.0
    %744 = vmatprep.subr.mxu0 0.0
    %745 = vmatpush1.xpose.msra.mxu0 0.0
    %746 = vmatprep.subr.mxu0 0.0
    %747 = vmatpush1.xpose.msra.mxu0 0.0
    %748 = vmatprep.subr.mxu0 0.0
    %749 = vmatpush1.xpose.msra.mxu0 0.0
    %750 = vmatprep.subr.mxu0 0.0
    %751 = vmatpush1.xpose.msra.mxu0 0.0
    %752 = vmatprep.subr.mxu0 0.0
    %753 = vmatpush1.xpose.msra.mxu0 0.0
    %754 = vmatprep.subr.mxu0 0.0
    %755 = vmatpush1.xpose.msra.mxu0 0.0
    %756 = vmatprep.subr.mxu0 0.0
    %757 = vmatpush1.xpose.msra.mxu0 %v726
    %758 = vmatprep.subr.mxu0 0.0
    %759 = vmatpush1.xpose.msra.mxu0 %v723
    %760 = vmatprep.subr.mxu0 0.0
    %761 = vmatpush2.xpose.msra.mxu0 0.0
    %762 = vmatprep.subr.mxu0 0.0
    %763 = vmatpush2.xpose.msra.mxu0 0.0
    %764 = vmatprep.subr.mxu0 0.0
    %765 = vmatpush2.xpose.msra.mxu0 0.0
    %766 = vmatprep.subr.mxu0 0.0
    %767 = vmatpush2.xpose.msra.mxu0 0.0
    %768 = vmatprep.subr.mxu0 0.0
    %769 = vmatpush2.xpose.msra.mxu0 0.0
    %770 = vmatprep.subr.mxu0 0.0
    %771 = vmatpush2.xpose.msra.mxu0 0.0
    %772 = vmatprep.subr.mxu0 0.0
    %773 = vmatpush2.xpose.msra.mxu0 0.0
    %774 = vmatprep.subr.mxu0 0.0
    %775 = vmatpush2.xpose.msra.mxu0 0.0
    %776 = vmatprep.subr.mxu0 0.0
    %777 = vmatpush2.xpose.msra.mxu0 0.0
    %778 = vmatprep.subr.mxu0 0.0
    %779 = vmatpush2.xpose.msra.mxu0 0.0
    %780 = vmatprep.subr.mxu0 0.0
    %781 = vmatpush2.xpose.msra.mxu0 0.0
    %782 = vmatprep.subr.mxu0 0.0
    %783 = vmatpush2.xpose.msra.mxu0 0.0
    %784 = vmatprep.subr.mxu0 0.0
    %785 = vmatpush2.xpose.msra.mxu0 0.0
    %786 = vmatprep.subr.mxu0 0.0
    %787 = vmatpush2.xpose.msra.mxu0 0.0
    %788 = vmatprep.subr.mxu0 0.0
    %789 = vmatpush2.xpose.msra.mxu0 0.0
    %790 = vmatprep.subr.mxu0 0.0
    %791 = vmatpush2.xpose.msra.mxu0 0.0
    %792 = vmatprep.mubr.f32.mxu0 0.0
    %793 = vmatmul.mubr.f32.gmra.mxu0 %v717
    %v794 = vpop.f32.mrf.mxu0
    %v795 = vadd.f32 0.0, %v794
    %v796 = vpop.f32.mrf.mxu0
    %797 = vmatprep.mubr.f32.mxu0 0.0
    %798 = vmatmul.mubr.f32.gmra.mxu0 %v720
    %v799 = vpop.f32.mrf.mxu0
    %v800 = vadd.f32 0.0, %v799
    %v801 = vpop.f32.mrf.mxu0
    %802 = vdwg.mxu0
    %v803 = vld [vmem:[#allocation7] sm:$0x3]
    %v804 = vld [vmem:[#allocation7 + $0x2] sm:$0x3]
    %v805 = vld [vmem:[#allocation7 + $0x4] sm:$0x3]
    %v806 = vld [vmem:[#allocation7 + $0x6] sm:$0x3]
    %v807 = vld [vmem:[#allocation7 + $0x8] sm:$0x3]
    %v808 = vld [vmem:[#allocation7 + $0xa] sm:$0x3]
    %v809 = vld [vmem:[#allocation7 + $0xc] sm:$0x3]
    %v810 = vld [vmem:[#allocation7 + $0xe] sm:$0x3]
    %v811 = vld [vmem:[#allocation7 + $0x10] sm:$0x3]
    %v812 = vld [vmem:[#allocation7 + $0x12] sm:$0x3]
    %v813 = vld [vmem:[#allocation7 + $0x14] sm:$0x3]
    %v814 = vld [vmem:[#allocation7 + $0x16] sm:$0x3]
    %v815 = vld [vmem:[#allocation7 + $0x18] sm:$0x3]
    %v816 = vld [vmem:[#allocation7 + $0x1a] sm:$0x3]
    %v817 = vld [vmem:[#allocation7 + $0x1c] sm:$0x3]
    %v818 = vld [vmem:[#allocation7 + $0x1e] sm:$0x3]
    %vm819 = vnez %v803
    %vm820 = vnez %v804
    %vm821 = vnez %v805
    %vm822 = vnez %v806
    %vm823 = vnez %v807
    %vm824 = vnez %v808
    %vm825 = vnez %v809
    %vm826 = vnez %v810
    %vm827 = vnez %v811
    %vm828 = vnez %v812
    %vm829 = vnez %v813
    %vm830 = vnez %v814
    %vm831 = vnez %v815
    %vm832 = vnez %v816
    %vm833 = vnez %v817
    %vm834 = vnez %v818
    %v835 = vsel %vm819, 16843009, 0
    %v836 = vsel %vm820, 16843009, 0
    %v837 = vsel %vm821, 16843009, 0
    %v838 = vsel %vm822, 16843009, 0
    %v839 = vsel %vm823, 16843009, 0
    %v840 = vsel %vm824, 16843009, 0
    %v841 = vsel %vm825, 16843009, 0
    %v842 = vsel %vm826, 16843009, 0
    %v843 = vsel %vm827, 16843009, 0
    %v844 = vsel %vm828, 16843009, 0
    %v845 = vsel %vm829, 16843009, 0
    %v846 = vsel %vm830, 16843009, 0
    %v847 = vsel %vm831, 16843009, 0
    %v848 = vsel %vm832, 16843009, 0
    %v849 = vsel %vm833, 16843009, 0
    %v850 = vsel %vm834, 16843009, 0
    %v851 = vunpack.c.0.s8 %v835
    %v852 = vunpack.c.0.s8 %v836
    %v853 = vunpack.c.0.s8 %v837
    %v854 = vunpack.c.0.s8 %v838
    %v855 = vunpack.c.0.s8 %v839
    %v856 = vunpack.c.0.s8 %v840
    %v857 = vunpack.c.0.s8 %v841
    %v858 = vunpack.c.0.s8 %v842
    %v859 = vunpack.c.0.s8 %v843
    %v860 = vunpack.c.0.s8 %v844
    %v861 = vunpack.c.0.s8 %v845
    %v862 = vunpack.c.0.s8 %v846
    %v863 = vunpack.c.0.s8 %v847
    %v864 = vunpack.c.0.s8 %v848
    %v865 = vunpack.c.0.s8 %v849
    %v866 = vunpack.c.0.s8 %v850
    %vm867 = vcmp.ne.s32.totalorder %v851, 0
    %vm868 = vcmp.ne.s32.totalorder %v852, 0
    %vm869 = vcmp.ne.s32.totalorder %v853, 0
    %vm870 = vcmp.ne.s32.totalorder %v854, 0
    %vm871 = vcmp.ne.s32.totalorder %v855, 0
    %vm872 = vcmp.ne.s32.totalorder %v856, 0
    %vm873 = vcmp.ne.s32.totalorder %v857, 0
    %vm874 = vcmp.ne.s32.totalorder %v858, 0
    %vm875 = vcmp.ne.s32.totalorder %v859, 0
    %vm876 = vcmp.ne.s32.totalorder %v860, 0
    %vm877 = vcmp.ne.s32.totalorder %v861, 0
    %vm878 = vcmp.ne.s32.totalorder %v862, 0
    %vm879 = vcmp.ne.s32.totalorder %v863, 0
    %vm880 = vcmp.ne.s32.totalorder %v864, 0
    %vm881 = vcmp.ne.s32.totalorder %v865, 0
    %vm882 = vcmp.ne.s32.totalorder %v866, 0
    %v883 = vsel %vm867, -1e+09, %v186
    %v884 = vsel %vm868, -1e+09, %v191
    %v885 = vsel %vm869, -1e+09, %v273
    %v886 = vsel %vm870, -1e+09, %v278
    %v887 = vsel %vm871, -1e+09, %v360
    %v888 = vsel %vm872, -1e+09, %v365
    %v889 = vsel %vm873, -1e+09, %v447
    %v890 = vsel %vm874, -1e+09, %v452
    %v891 = vsel %vm875, -1e+09, %v534
    %v892 = vsel %vm876, -1e+09, %v539
    %v893 = vsel %vm877, -1e+09, %v621
    %v894 = vsel %vm878, -1e+09, %v626
    %v895 = vsel %vm879, -1e+09, %v708
    %v896 = vsel %vm880, -1e+09, %v713
    %v897 = vsel %vm881, -1e+09, %v795
    %v898 = vsel %vm882, -1e+09, %v800
    %vm899 = vcmask 130048
    %900 = vst.msk [vmem:[#allocation8] sm:$0xff] %vm899, %v883
    %901 = vst.msk [vmem:[#allocation8 + $0x8] sm:$0xff] %vm899, %v884
    %902 = vst.msk [vmem:[#allocation8 + $0x10] sm:$0xff] %vm899, %v885
    %903 = vst.msk [vmem:[#allocation8 + $0x18] sm:$0xff] %vm899, %v886
    %904 = vst.msk [vmem:[#allocation8 + $0x20] sm:$0xff] %vm899, %v887
    %905 = vst.msk [vmem:[#allocation8 + $0x28] sm:$0xff] %vm899, %v888
    %906 = vst.msk [vmem:[#allocation8 + $0x30] sm:$0xff] %vm899, %v889
    %907 = vst.msk [vmem:[#allocation8 + $0x38] sm:$0xff] %vm899, %v890
    %908 = vst.msk [vmem:[#allocation8 + $0x40] sm:$0xff] %vm899, %v891
    %909 = vst.msk [vmem:[#allocation8 + $0x48] sm:$0xff] %vm899, %v892
    %910 = vst.msk [vmem:[#allocation8 + $0x50] sm:$0xff] %vm899, %v893
    %911 = vst.msk [vmem:[#allocation8 + $0x58] sm:$0xff] %vm899, %v894
    %912 = vst.msk [vmem:[#allocation8 + $0x60] sm:$0xff] %vm899, %v895
    %913 = vst.msk [vmem:[#allocation8 + $0x68] sm:$0xff] %vm899, %v896
    %914 = vst.msk [vmem:[#allocation8 + $0x70] sm:$0xff] %vm899, %v897
    %915 = vst.msk [vmem:[#allocation8 + $0x78] sm:$0xff] %vm899, %v898
    // Predicated region
    $region26: #{tpu_custom_call.1} parent=1 // pred_check
      _
    $region27: #{tpu_custom_call.1} parent=1 // pred_check_branch
      %917 = sbr.rel (0) target = $region29
    $region28: #{tpu_custom_call.1} parent=1 // pred_region
      %s919 = ssub.s32 2048, 2048
      %920 = vsyncadd [#allocation4], %s919
      %s921 = sshll.u32 [#allocation8], 4
      %s922 = int_to_ptr.vmem [resolvable:$true] %s921
      %927 = dma.vmem_to_hbm [thread:$0]  %s922, 2048, %s3, [#allocation4], 128, 128, 8
    $region29: #{tpu_custom_call.1} parent=1 // pred_fallthru
      _
    // Predicated region
    $region30: #{tpu_custom_call.1} parent=1 // pred_check
      _
    $region31: #{tpu_custom_call.1} parent=1 // pred_check_branch
      %929 = sbr.rel (0) target = $region33
    $region32: #{tpu_custom_call.1} parent=1 // pred_region
      %930 = dma.done [#allocation4], 2048
    $region33: #{tpu_custom_call.1} parent=1 // pred_fallthru
      _
    %931 = vsyncpa [#allocation3], 1
    %932 = vsyncpa [#allocation6], 1
    %933 = vsyncpa [#allocation4], 1

</llo_original>
